<compile_context>
chip_gen: v6e
topology: v6e:2x2x1
jax: 0.10.0
libtpu: 0.0.40
codegen_flags: <defaults>
</compile_context>

<pallas_src>
import functools

import jax
import jax.numpy as jnp
from jax.experimental import pallas as pl
from jax.experimental.pallas import tpu as pltpu

HIDDEN = 768
N_OBJ = 49 * 2          # 98 object-head columns  (lanes [0, 98))
N_SUB = 2               # subject-head columns    (lanes [98, 100))
FUSED = 128             # fused lane width (one lane tile; lanes 100..127 zero)
TM_MAX = 1024           # sequence-tile cap (double-buffered blocks ~4-5 MiB)


def object_model_kernel(hid_ref, w_ref, b_ref, obj_ref, sub_ref):
    # hid_ref: [1, TM, 768] bf16  encoder-output tile for this (batch, seq) block
    # w_ref  : [768, 128]   bf16  fused weights (obj lanes 0..97, sub lanes 98..99)
    # b_ref  : [1, 1, 128]  f32   per-batch fused bias (sp_proj @ Wobj folded in)
    # obj_ref: [1, TM, 98]  f32   sigmoid(obj_logits) ** 4
    # sub_ref: [1, TM, 2]   f32   linear subject head
    y = jnp.dot(hid_ref[0], w_ref[...],
                preferred_element_type=jnp.float32) + b_ref[0]      # [TM, 128]
    s = jax.nn.sigmoid(y[:, :N_OBJ])
    s2 = s * s
    obj_ref[0] = s2 * s2
    sub_ref[0] = y[:, N_OBJ:N_OBJ + N_SUB]


def prepare_object_model_params(wsp, bsp, wobj, bobj, wsub, bsub):
    """One-time (model-load) weight fusion/padding — not per-call work."""
    h = wobj.shape[0]
    w_fused = jnp.zeros((h, FUSED), jnp.float32)
    w_fused = w_fused.at[:, :N_OBJ].set(wobj.astype(jnp.float32))
    w_fused = w_fused.at[:, N_OBJ:N_OBJ + N_SUB].set(wsub.astype(jnp.float32))
    return {
        "wsp": wsp.astype(jnp.float32),
        "bsp": bsp.astype(jnp.float32),
        "wobj": wobj.astype(jnp.float32),   # f32 copy for the tiny wrapper fold
        "bobj": bobj.astype(jnp.float32),
        "bsub": bsub.astype(jnp.float32),
        "w_fused": w_fused.astype(jnp.bfloat16),   # bf16 halves weight DMA bytes
    }


def _pick_tm(seq):
    # Full-extent block for short sequences (always legal); otherwise cap at
    # TM_MAX (a multiple of 16, so bf16 sublane packing is satisfied) and let
    # pl.cdiv + Pallas handle the ragged last block.
    return seq if seq <= TM_MAX else TM_MAX


@jax.jit
def object_model_forward(hid, subject_position, params):
    """hid: [bs, seq, 768] encoder output (bf16); subject_position: [bs, 2]."""
    bs, seq, h = hid.shape
    tm = _pick_tm(seq)

    # dense_subject_position: [bs,2] @ [2,768] + b  (tiny XLA matmul).
    sp_proj = subject_position.astype(jnp.float32) @ params["wsp"] + params["bsp"]

    # Fold sp_proj into the OBJECT lanes of a per-batch bias:
    #   (hid + sp) @ Wobj + bobj == hid @ Wobj + (sp @ Wobj + bobj)
    # Subject lanes keep plain bsub (subject head acts on hid alone).
    obj_bias = params["bobj"] + sp_proj @ params["wobj"]             # [bs, 98]
    bias = jnp.zeros((bs, 1, FUSED), jnp.float32)
    bias = bias.at[:, 0, :N_OBJ].set(obj_bias)
    bias = bias.at[:, 0, N_OBJ:N_OBJ + N_SUB].set(params["bsub"])

    obj, sub = pl.pallas_call(
        object_model_kernel,
        out_shape=(jax.ShapeDtypeStruct((bs, seq, N_OBJ), jnp.float32),
                   jax.ShapeDtypeStruct((bs, seq, N_SUB), jnp.float32)),
        grid_spec=pltpu.PrefetchScalarGridSpec(
            num_scalar_prefetch=0,
            grid=(bs, pl.cdiv(seq, tm)),
            in_specs=[
                pl.BlockSpec((1, tm, h), lambda b, s: (b, s, 0)),      # hid (bf16)
                pl.BlockSpec((h, FUSED), lambda b, s: (0, 0)),         # W_fused
                pl.BlockSpec((1, 1, FUSED), lambda b, s: (b, 0, 0)),   # bias
            ],
            out_specs=(
                pl.BlockSpec((1, tm, N_OBJ), lambda b, s: (b, s, 0)),  # object
                pl.BlockSpec((1, tm, N_SUB), lambda b, s: (b, s, 0)),  # subject
            ),
        ),
        compiler_params=pltpu.CompilerParams(
            dimension_semantics=("parallel", "parallel")),
    )(hid.astype(jnp.bfloat16), params["w_fused"], bias)

    # Trivial last-dim split; layout-preserving (free) in XLA.
    return sub, obj.reshape(bs, seq, 49, 2)


def reference_forward(hid, subject_position, wsp, bsp, wobj, bobj, wsub, bsub):
    bs, seq, _ = hid.shape
    hid = hid.astype(jnp.float32)
    sub = hid @ wsub + bsub
    sp_proj = subject_position @ wsp + bsp                           # [bs, 768]
    x = hid + sp_proj[:, None, :]
    obj = x @ wobj + bobj
    obj = jax.nn.sigmoid(obj) ** 4
    return sub, obj.reshape(bs, seq, 49, 2)


if __name__ == "__main__":
    bs, seq, vocab = 2, 16, 100
    key = jax.random.PRNGKey(0)
    keys = jax.random.split(key, 9)

    # deterministic synthetic parameters
    emb = jax.random.normal(keys[0], (vocab, HIDDEN), jnp.float32) * 0.02
    wsub = jax.random.normal(keys[1], (HIDDEN, 2), jnp.float32) * 0.02
    bsub = jax.random.normal(keys[2], (2,), jnp.float32) * 0.02
    wsp = jax.random.normal(keys[3], (2, HIDDEN), jnp.float32) * 0.02
    bsp = jax.random.normal(keys[4], (HIDDEN,), jnp.float32) * 0.02
    wobj = jax.random.normal(keys[5], (HIDDEN, N_OBJ), jnp.float32) * 0.02
    bobj = jax.random.normal(keys[6], (N_OBJ,), jnp.float32) * 0.02

    # inputs
    input_ids = jax.random.randint(keys[7], (bs, seq), 0, vocab)
    subject_position = jax.random.normal(keys[8], (bs, 2), jnp.float32)
    attention_mask = jnp.ones((bs, seq), jnp.float32)  # unused by synthetic encoder

    # synthetic encoder body (glue): embedding lookup, emits bf16 activations
    hid = emb[input_ids].astype(jnp.bfloat16)                        # [bs, seq, 768]

    # one-time weight fusion (model-load time, not per-call)
    params = prepare_object_model_params(wsp, bsp, wobj, bobj, wsub, bsub)

    subject_out, object_out = object_model_forward(hid, subject_position, params)
    jax.block_until_ready((subject_out, object_out))

    ref_sub, ref_obj = reference_forward(
        hid, subject_position, wsp, bsp, wobj, bobj, wsub, bsub)

    assert subject_out.shape == (bs, seq, 2)
    assert object_out.shape == (bs, seq, 49, 2)
    assert jnp.allclose(subject_out, ref_sub, atol=2e-4, rtol=2e-3), (
        float(jnp.max(jnp.abs(subject_out - ref_sub))))
    assert jnp.allclose(object_out, ref_obj, atol=2e-4, rtol=2e-3), (
        float(jnp.max(jnp.abs(object_out - ref_obj))))

    print("KERNEL_OK")
</pallas_src>

<mosaic_0001>
module attributes {stable_mosaic.version = 11 : i64} {
  func.func @object_model_kernel(%arg0: i32, %arg1: i32, %arg2: memref<1x16x768xbf16, #tpu.memory_space<vmem>>, %arg3: memref<768x128xbf16, #tpu.memory_space<vmem>>, %arg4: memref<1x1x128xf32, #tpu.memory_space<vmem>>, %arg5: memref<1x16x98xf32, #tpu.memory_space<vmem>>, %arg6: memref<1x16x2xf32, #tpu.memory_space<vmem>>) attributes {dimension_semantics = [#tpu.dimension_semantics<parallel>, #tpu.dimension_semantics<parallel>], iteration_bounds = array<i64: 2, 1>, scalar_prefetch = 0 : i64, scratch_operands = 0 : i64, tpu.core_type = #tpu.core_type<tc>, window_params = [{transform_indices = @transform_0, window_bounds = array<i64: 1, 16, 768>}, {pipeline_mode = #tpu.pipeline_mode<synchronous>, transform_indices = @transform_1, window_bounds = array<i64: 768, 128>}, {transform_indices = @transform_2, window_bounds = array<i64: 1, 1, 128>}, {transform_indices = @transform_3, window_bounds = array<i64: 1, 16, 98>}, {transform_indices = @transform_4, window_bounds = array<i64: 1, 16, 2>}]} {
    %c0 = arith.constant 0 : index
    %c0_0 = arith.constant 0 : index
    %c0_1 = arith.constant 0 : index
    %0 = vector.load %arg2[%c0, %c0_0, %c0_1] : memref<1x16x768xbf16, #tpu.memory_space<vmem>>, vector<1x16x768xbf16>
    %1 = vector.shape_cast %0 : vector<1x16x768xbf16> to vector<16x768xbf16>
    %c0_2 = arith.constant 0 : index
    %c0_3 = arith.constant 0 : index
    %2 = vector.load %arg3[%c0_2, %c0_3] : memref<768x128xbf16, #tpu.memory_space<vmem>>, vector<768x128xbf16>
    %cst = arith.constant dense<0.000000e+00> : vector<16x128xf32>
    %3 = tpu.matmul %1, %2, %cst {dimension_numbers = #tpu.dot_dimension_numbers<[1], [0], [0], [1], [0, 0, 1, 1], [], []>} : vector<16x768xbf16>, vector<768x128xbf16>, vector<16x128xf32> -> vector<16x128xf32>
    %c0_4 = arith.constant 0 : index
    %c0_5 = arith.constant 0 : index
    %c0_6 = arith.constant 0 : index
    %4 = vector.load %arg4[%c0_4, %c0_5, %c0_6] : memref<1x1x128xf32, #tpu.memory_space<vmem>>, vector<1x1x128xf32>
    %5 = vector.shape_cast %4 : vector<1x1x128xf32> to vector<1x128xf32>
    %6 = vector.broadcast %5 : vector<1x128xf32> to vector<16x128xf32>
    %7 = arith.addf %3, %6 : vector<16x128xf32>
    %8 = vector.extract_strided_slice %7 {offsets = [0, 0], sizes = [16, 98], strides = [1, 1]} : vector<16x128xf32> to vector<16x98xf32>
    %9 = arith.negf %8 : vector<16x98xf32>
    %10 = math.exp %9 : vector<16x98xf32>
    %cst_7 = arith.constant 1.000000e+00 : f32
    %11 = vector.broadcast %cst_7 : f32 to vector<16x98xf32>
    %12 = arith.addf %11, %10 : vector<16x98xf32>
    %13 = arith.divf %11, %12 : vector<16x98xf32>
    %14 = arith.mulf %13, %13 : vector<16x98xf32>
    %15 = arith.mulf %14, %14 : vector<16x98xf32>
    %c0_8 = arith.constant 0 : index
    %c0_9 = arith.constant 0 : index
    %c0_10 = arith.constant 0 : index
    %16 = vector.load %arg5[%c0_8, %c0_9, %c0_10] : memref<1x16x98xf32, #tpu.memory_space<vmem>>, vector<1x16x98xf32>
    %17 = vector.shape_cast %16 : vector<1x16x98xf32> to vector<16x98xf32>
    %18 = vector.shape_cast %15 : vector<16x98xf32> to vector<1x16x98xf32>
    tpu.vector_store %arg5[%c0_8, %c0_9, %c0_10], %18 {strides = array<i32>} : memref<1x16x98xf32, #tpu.memory_space<vmem>>, vector<1x16x98xf32>,
    %19 = vector.extract_strided_slice %7 {offsets = [0, 98], sizes = [16, 2], strides = [1, 1]} : vector<16x128xf32> to vector<16x2xf32>
    %c0_11 = arith.constant 0 : index
    %c0_12 = arith.constant 0 : index
    %c0_13 = arith.constant 0 : index
    %20 = vector.load %arg6[%c0_11, %c0_12, %c0_13] : memref<1x16x2xf32, #tpu.memory_space<vmem>>, vector<1x16x2xf32>
    %21 = vector.shape_cast %20 : vector<1x16x2xf32> to vector<16x2xf32>
    %22 = vector.shape_cast %19 : vector<16x2xf32> to vector<1x16x2xf32>
    tpu.vector_store %arg6[%c0_11, %c0_12, %c0_13], %22 {strides = array<i32>} : memref<1x16x2xf32, #tpu.memory_space<vmem>>, vector<1x16x2xf32>,
    return
  }
  func.func @transform_0(%arg0: i32, %arg1: i32) -> (i32, i32, i32) {
    %c0_i32 = arith.constant 0 : i32
    %c0_i32_0 = arith.constant 0 : i32
    return %arg0, %arg1, %c0_i32 : i32, i32, i32
  }
  func.func @transform_1(%arg0: i32, %arg1: i32) -> (i32, i32) {
    %c0_i32 = arith.constant 0 : i32
    %c0_i32_0 = arith.constant 0 : i32
    %c0_i32_1 = arith.constant 0 : i32
    return %c0_i32, %c0_i32_0 : i32, i32
  }
  func.func @transform_2(%arg0: i32, %arg1: i32) -> (i32, i32, i32) {
    %c0_i32 = arith.constant 0 : i32
    %c0_i32_0 = arith.constant 0 : i32
    %c0_i32_1 = arith.constant 0 : i32
    return %arg0, %c0_i32, %c0_i32_0 : i32, i32, i32
  }
  func.func @transform_3(%arg0: i32, %arg1: i32) -> (i32, i32, i32) {
    %c0_i32 = arith.constant 0 : i32
    %c0_i32_0 = arith.constant 0 : i32
    return %arg0, %arg1, %c0_i32 : i32, i32, i32
  }
  func.func @transform_4(%arg0: i32, %arg1: i32) -> (i32, i32, i32) {
    %c0_i32 = arith.constant 0 : i32
    %c0_i32_0 = arith.constant 0 : i32
    return %arg0, %arg1, %c0_i32 : i32, i32, i32
  }
}

</mosaic_0001>

<llo_original>
// kernel: object_model_forward.1
$region0: #{object_model_forward.1}
  #allocation0 [shape = 'u32[]', space=smem, size = 0x4, offset = 0x4, fixed_abs, tag = 'smem constant byte address 0x4 - core index']
  #allocation1 [shape = 'u32[144,128]{1,0:T(1,128)}', space=vmem, size = 0x12000, scoped, tag = 'internal scratch']
  %s0 = inlined_call_operand.vmem [shape: bf16[2,16,768], index: 0, kind: input, shape index: {}]
  %s1 = inlined_call_operand.vmem [shape: bf16[768,128], index: 1, kind: input, shape index: {}]
  %s2 = inlined_call_operand.vmem [shape: f32[2,1,128], index: 2, kind: input, shape index: {}]
  %s3 = inlined_call_operand.vmem [shape: f32[2,16,98], index: 3, kind: output, shape index: {0}]
  %s4 = inlined_call_operand.vmem [shape: f32[2,16,2], index: 4, kind: output, shape index: {1}]
  %5 = xla_tuple %s3, %s4
  %s6 = sld [smem:[#allocation0]]
  $region53: #{object_model_forward.1} parent=0
    _
  %s8 = ssub.s32 1, %s6
  %s9 = scalar_select 0, %s8, %s6
  loop: start=0, step=1, limit=4
  $region2: #{object_model_forward.1} parent=0 // loop_pre_header
    _
  $region3: #{object_model_forward.1} parent=0 // loop_header
    %s11 = sphi 0, %s15
    %p12 = scmp.ge.s32.totalorder %s11, 4
    %s18 = sphi 0, %s30
    %s19 = sphi 0, %s26
    %s20 = sphi 0, %s18
    %s21 = sphi 0, %s19
    %s22 = sphi 0, %s20
    %s23 = sphi 0, %s21
    %s35 = sphi 0, %s37
    %s38 = sphi 0, %s35
    %s39 = sphi 0, %s38
    %s55 = sphi 0, %s39
    %s59 = sphi 0, %s59
    %s61 = sphi 0, %s59
    %s62 = sphi 0, %s61
    %s76 = sphi 0, %s62
    %s82 = sphi 0, %s84
    %s85 = sphi 0, %s82
    %s86 = sphi 0, %s85
    %s102 = sphi 0, %s86
    %s110 = sphi 0, %s112
    %s113 = sphi 0, %s110
    %s114 = sphi 0, %s113
    %s130 = sphi 0, %s114
    %s138 = sphi 0, %s140
    %s141 = sphi 0, %s138
    %s142 = sphi 0, %s141
    %s158 = sphi 0, %s142
  $region4: #{object_model_forward.1} parent=0 // loop_header_branch
    %14 = sbr.rel (%p12) target = $region8
  $region5: #{object_model_forward.1} parent=0 // loop_body
    %s16 = ssub.s32 %s11, 1
    %s17 = ssub.s32 %s11, 2
    %s24 = sadd.s32 1, %s19
    %p25 = scmp.ge.s32.totalorder %s24, 1
    %s26 = scalar_select %p25, 0, %s24
    %s27 = sadd.s32 1, %s18
    %s28 = scalar_select %p25, %s27, %s18
    %p29 = scmp.ge.s32.totalorder %s28, 2
    %s30 = scalar_select %p29, 0, %s28
    %s31 = ssub.s32 %s18, %s30
    %s32 = ssub.s32 %s19, %s26
    %s33 = sor.u32 %s31, %s32
    %p34 = scmp.eq.s32.totalorder %s33, 0
    %s36 = sadd.s32 %s35, 1
    %s37 = scalar_select %p34, %s35, %s36
    %p40 = pneg %p34
    %p41 = scmp.eq.s32.totalorder %s11, 1
    %p42 = por %p40, %p41
    %p43 = scmp.ne.s32.totalorder %s35, %s38
    %p44 = scmp.eq.s32.totalorder %s11, 0
    %p45 = por %p43, %p44
    %p46 = scmp.ne.s32.totalorder %s35, %s38
    %p47 = scmp.eq.s32.totalorder %s16, 1
    %p48 = por %p46, %p47
    %p49 = scmp.ne.s32.totalorder %s38, %s39
    %p50 = scmp.eq.s32.totalorder %s16, 0
    %p51 = por %p49, %p50
    %p52 = scmp.ne.s32.totalorder %s38, %s39
    %p53 = scmp.eq.s32.totalorder %s17, 1
    %p54 = por %p52, %p53
    %p56 = scmp.ne.s32.totalorder %s39, %s55
    %p57 = scmp.eq.s32.totalorder %s17, 0
    %p58 = por %p56, %p57
    %s60 = sadd.s32 %s59, 1
    %p63 = scmp.eq.s32.totalorder %s11, 1
    %p64 = scmp.ne.s32.totalorder %s59, %s61
    %p65 = scmp.eq.s32.totalorder %s11, 0
    %p66 = por %p64, %p65
    %p67 = scmp.ne.s32.totalorder %s59, %s61
    %p68 = scmp.eq.s32.totalorder %s16, 1
    %p69 = por %p67, %p68
    %p70 = scmp.ne.s32.totalorder %s61, %s62
    %p71 = scmp.eq.s32.totalorder %s16, 0
    %p72 = por %p70, %p71
    %p73 = scmp.ne.s32.totalorder %s61, %s62
    %p74 = scmp.eq.s32.totalorder %s17, 1
    %p75 = por %p73, %p74
    %p77 = scmp.ne.s32.totalorder %s62, %s76
    %p78 = scmp.eq.s32.totalorder %s17, 0
    %p79 = por %p77, %p78
    %s80 = ssub.s32 %s18, %s30
    %p81 = scmp.eq.s32.totalorder %s80, 0
    %s83 = sadd.s32 %s82, 1
    %s84 = scalar_select %p81, %s82, %s83
    %p87 = pneg %p81
    %p88 = scmp.eq.s32.totalorder %s11, 1
    %p89 = por %p87, %p88
    %p90 = scmp.ne.s32.totalorder %s82, %s85
    %p91 = scmp.eq.s32.totalorder %s11, 0
    %p92 = por %p90, %p91
    %p93 = scmp.ne.s32.totalorder %s82, %s85
    %p94 = scmp.eq.s32.totalorder %s16, 1
    %p95 = por %p93, %p94
    %p96 = scmp.ne.s32.totalorder %s85, %s86
    %p97 = scmp.eq.s32.totalorder %s16, 0
    %p98 = por %p96, %p97
    %p99 = scmp.ne.s32.totalorder %s85, %s86
    %p100 = scmp.eq.s32.totalorder %s17, 1
    %p101 = por %p99, %p100
    %p103 = scmp.ne.s32.totalorder %s86, %s102
    %p104 = scmp.eq.s32.totalorder %s17, 0
    %p105 = por %p103, %p104
    %s106 = ssub.s32 %s18, %s30
    %s107 = ssub.s32 %s19, %s26
    %s108 = sor.u32 %s106, %s107
    %p109 = scmp.eq.s32.totalorder %s108, 0
    %s111 = sadd.s32 %s110, 1
    %s112 = scalar_select %p109, %s110, %s111
    %p115 = pneg %p109
    %p116 = scmp.eq.s32.totalorder %s11, 1
    %p117 = por %p115, %p116
    %p118 = scmp.ne.s32.totalorder %s110, %s113
    %p119 = scmp.eq.s32.totalorder %s11, 0
    %p120 = por %p118, %p119
    %p121 = scmp.ne.s32.totalorder %s110, %s113
    %p122 = scmp.eq.s32.totalorder %s16, 1
    %p123 = por %p121, %p122
    %p124 = scmp.ne.s32.totalorder %s113, %s114
    %p125 = scmp.eq.s32.totalorder %s16, 0
    %p126 = por %p124, %p125
    %p127 = scmp.ne.s32.totalorder %s113, %s114
    %p128 = scmp.eq.s32.totalorder %s17, 1
    %p129 = por %p127, %p128
    %p131 = scmp.ne.s32.totalorder %s114, %s130
    %p132 = scmp.eq.s32.totalorder %s17, 0
    %p133 = por %p131, %p132
    %s134 = ssub.s32 %s18, %s30
    %s135 = ssub.s32 %s19, %s26
    %s136 = sor.u32 %s134, %s135
    %p137 = scmp.eq.s32.totalorder %s136, 0
    %s139 = sadd.s32 %s138, 1
    %s140 = scalar_select %p137, %s138, %s139
    %p143 = pneg %p137
    %p144 = scmp.eq.s32.totalorder %s11, 1
    %p145 = por %p143, %p144
    %p146 = scmp.ne.s32.totalorder %s138, %s141
    %p147 = scmp.eq.s32.totalorder %s11, 0
    %p148 = por %p146, %p147
    %p149 = scmp.ne.s32.totalorder %s138, %s141
    %p150 = scmp.eq.s32.totalorder %s16, 1
    %p151 = por %p149, %p150
    %p152 = scmp.ne.s32.totalorder %s141, %s142
    %p153 = scmp.eq.s32.totalorder %s16, 0
    %p154 = por %p152, %p153
    %p155 = scmp.ne.s32.totalorder %s141, %s142
    %p156 = scmp.eq.s32.totalorder %s17, 1
    %p157 = por %p155, %p156
    %p159 = scmp.ne.s32.totalorder %s142, %s158
    %p160 = scmp.eq.s32.totalorder %s17, 0
    %p161 = por %p159, %p160
    %p162 = scmp.le.s32.totalorder 1, %s11
    %p163 = scmp.lt.s32.totalorder %s11, 3
    %p164 = pnand %p162, %p163
    %p165 = pneg %p164
    // Predicated region
    $region9: #{object_model_forward.1} parent=5 // pred_check
      _
    $region10: #{object_model_forward.1} parent=5 // pred_check_branch
      %167 = sbr.rel (%p164) target = $region12
    $region11: #{object_model_forward.1} parent=5 // pred_region
      %s168 = ssub.s32 %s11, 1
      // Predicated region
      $region13: #{object_model_forward.1} parent=11 // pred_check
        %p169 = pneg %p72
      $region14: #{object_model_forward.1} parent=11 // pred_check_branch
        %171 = sbr.rel (%p169) target = $region16
      $region15: #{object_model_forward.1} parent=11 // pred_region
        _
      $region16: #{object_model_forward.1} parent=11 // pred_fallthru
        _
    $region12: #{object_model_forward.1} parent=5 // pred_fallthru
      _
    %p172 = scmp.lt.s32.totalorder %s11, 2
    // Predicated region
    $region17: #{object_model_forward.1} parent=5 // pred_check
      %p173 = pneg %p172
    $region18: #{object_model_forward.1} parent=5 // pred_check_branch
      %175 = sbr.rel (%p173) target = $region20
    $region19: #{object_model_forward.1} parent=5 // pred_region
      // Predicated region
      $region21: #{object_model_forward.1} parent=19 // pred_check
        %p176 = pneg %p45
      $region22: #{object_model_forward.1} parent=19 // pred_check_branch
        %178 = sbr.rel (%p176) target = $region24
      $region23: #{object_model_forward.1} parent=19 // pred_region
        %s179 = smul.u32 2, %s19
        %p180 = scmp.lt.s32.totalorder %s18, 1
        %s181 = scalar_select %p180, %s18, 1
        %p182 = scmp.lt.s32.totalorder %s179, 1
        %s183 = scalar_select %p182, %s179, 1
        %s184 = smul.addr %s183, 6
        %s185 = smul.addr %s181, 12
        %s186 = sadd.s32 %s184, %s185
        %s187 = smul.addr %s186, 4
        %s188 = scalar_lea.vmem %s0, %s187
        %s189 = smul.u32 2, %s19
      $region24: #{object_model_forward.1} parent=19 // pred_fallthru
        _
      // Predicated region
      $region25: #{object_model_forward.1} parent=19 // pred_check
        %p190 = pneg %p92
      $region26: #{object_model_forward.1} parent=19 // pred_check_branch
        %192 = sbr.rel (%p190) target = $region28
      $region27: #{object_model_forward.1} parent=19 // pred_region
        %p193 = scmp.lt.s32.totalorder %s18, 1
        %s194 = scalar_select %p193, %s18, 1
        %s195 = scalar_lea.vmem %s2, %s194
      $region28: #{object_model_forward.1} parent=19 // pred_fallthru
        _
    $region20: #{object_model_forward.1} parent=5 // pred_fallthru
      _
    %p196 = scmp.le.s32.totalorder 1, %s11
    %p197 = scmp.lt.s32.totalorder %s11, 3
    %p198 = pnand %p196, %p197
    %p199 = pneg %p198
    // Predicated region
    $region29: #{object_model_forward.1} parent=5 // pred_check
      _
    $region30: #{object_model_forward.1} parent=5 // pred_check_branch
      %201 = sbr.rel (%p198) target = $region32
    $region31: #{object_model_forward.1} parent=5 // pred_region
      %s202 = ssub.s32 %s11, 1
      %s203 = smul.u32 2, %s21
      %p204 = scmp.lt.s32.totalorder %s20, 1
      %s205 = scalar_select %p204, %s20, 1
      %p206 = scmp.lt.s32.totalorder %s203, 1
      %s207 = scalar_select %p206, %s203, 1
      %s208 = smul.addr %s207, 6
      %s209 = smul.addr %s205, 12
      %s210 = sadd.s32 %s208, %s209
      %s211 = smul.addr %s210, 4
      %s212 = scalar_lea.vmem %s0, %s211
      %p213 = pneg %p51
      %p214 = pneg %p48
      %p215 = pneg %p72
      %p216 = pneg %p69
      %p217 = scmp.lt.s32.totalorder %s20, 1
      %s218 = scalar_select %p217, %s20, 1
      %s219 = scalar_lea.vmem %s2, %s218
      %p220 = pneg %p98
      %p221 = pneg %p95
      %p222 = pneg %p126
      %p223 = pneg %p123
      %s224 = smul.u32 2, %s21
      %p225 = scmp.lt.s32.totalorder %s20, 1
      %s226 = scalar_select %p225, %s20, 1
      %p227 = scmp.lt.s32.totalorder %s224, 1
      %s228 = scalar_select %p227, %s224, 1
      %s229 = smul.addr %s226, 2
      %s230 = sadd.s32 %s228, %s229
      %s231 = smul.addr %s230, 8
      %s232 = scalar_lea.vmem %s3, %s231
      %p233 = pneg %p154
      %p234 = pneg %p151
      %s235 = smul.u32 2, %s21
      %p236 = scmp.lt.s32.totalorder %s20, 1
      %s237 = scalar_select %p236, %s20, 1
      %p238 = scmp.lt.s32.totalorder %s235, 1
      %s239 = scalar_select %p238, %s235, 1
      %s240 = smul.addr %s237, 2
      %s241 = sadd.s32 %s239, %s240
      %s242 = smul.addr %s241, 8
      %s243 = scalar_lea.vmem %s4, %s242
      %s244 = smul.u32 2, %s21
      %p245 = scmp.lt.s32.totalorder %s20, 1
      %s246 = scalar_select %p245, %s20, 1
      %p247 = scmp.lt.s32.totalorder %s244, 1
      %s248 = scalar_select %p247, %s244, 1
      %s249 = smul.addr %s248, 6
      %s250 = smul.addr %s246, 12
      %s251 = sadd.s32 %s249, %s250
      %s252 = smul.addr %s251, 4
      %s253 = scalar_lea.vmem %s0, %s252
      %s254 = smul.u32 2, %s21
      %p255 = scmp.lt.s32.totalorder %s20, 1
      %s256 = scalar_select %p255, %s20, 1
      %s257 = scalar_lea.vmem %s2, %s256
      %s258 = smul.u32 2, %s21
      %p259 = scmp.lt.s32.totalorder %s20, 1
      %s260 = scalar_select %p259, %s20, 1
      %p261 = scmp.lt.s32.totalorder %s258, 1
      %s262 = scalar_select %p261, %s258, 1
      %s263 = smul.addr %s260, 2
      %s264 = sadd.s32 %s262, %s263
      %s265 = smul.addr %s264, 8
      %s266 = scalar_lea.vmem %s3, %s265
      %s267 = smul.u32 2, %s21
      %s268 = smul.u32 2, %s21
      %p269 = scmp.lt.s32.totalorder %s20, 1
      %s270 = scalar_select %p269, %s20, 1
      %p271 = scmp.lt.s32.totalorder %s268, 1
      %s272 = scalar_select %p271, %s268, 1
      %s273 = smul.addr %s270, 2
      %s274 = sadd.s32 %s272, %s273
      %s275 = smul.addr %s274, 8
      %s276 = scalar_lea.vmem %s4, %s275
      %s277 = smul.u32 2, %s21
      %v279 = vld [vmem:[%s253] sm:$0xff]
      %v280 = vld [vmem:[%s253 + $0x8] sm:$0xff]
      %v281 = vld [vmem:[%s253 + $0x10] sm:$0xff]
      %v282 = vld [vmem:[%s253 + $0x18] sm:$0xff]
      %v283 = vld [vmem:[%s253 + $0x20] sm:$0xff]
      %v284 = vld [vmem:[%s253 + $0x28] sm:$0xff]
      %v285 = vld [vmem:[%s1] sm:$0xf]
      %v286 = vld [vmem:[%s1 + $0x4] sm:$0xf]
      %v287 = vld [vmem:[%s1 + $0x8] sm:$0xf]
      %v288 = vld [vmem:[%s1 + $0xc] sm:$0xf]
      %v289 = vld [vmem:[%s1 + $0x10] sm:$0xf]
      %v290 = vld [vmem:[%s1 + $0x14] sm:$0xf]
      %v291 = vld [vmem:[%s1 + $0x18] sm:$0xf]
      %v292 = vld [vmem:[%s1 + $0x1c] sm:$0xf]
      %v293 = vld [vmem:[%s1 + $0x20] sm:$0xf]
      %v294 = vld [vmem:[%s1 + $0x24] sm:$0xf]
      %v295 = vld [vmem:[%s1 + $0x28] sm:$0xf]
      %v296 = vld [vmem:[%s1 + $0x2c] sm:$0xf]
      %v297 = vld [vmem:[%s1 + $0x30] sm:$0xf]
      %v298 = vld [vmem:[%s1 + $0x34] sm:$0xf]
      %v299 = vld [vmem:[%s1 + $0x38] sm:$0xf]
      %v300 = vld [vmem:[%s1 + $0x3c] sm:$0xf]
      %v301 = vld [vmem:[%s1 + $0x40] sm:$0xf]
      %v302 = vld [vmem:[%s1 + $0x44] sm:$0xf]
      %v303 = vld [vmem:[%s1 + $0x48] sm:$0xf]
      %v304 = vld [vmem:[%s1 + $0x4c] sm:$0xf]
      %v305 = vld [vmem:[%s1 + $0x50] sm:$0xf]
      %v306 = vld [vmem:[%s1 + $0x54] sm:$0xf]
      %v307 = vld [vmem:[%s1 + $0x58] sm:$0xf]
      %v308 = vld [vmem:[%s1 + $0x5c] sm:$0xf]
      %v309 = vld [vmem:[%s1 + $0x60] sm:$0xf]
      %v310 = vld [vmem:[%s1 + $0x64] sm:$0xf]
      %v311 = vld [vmem:[%s1 + $0x68] sm:$0xf]
      %v312 = vld [vmem:[%s1 + $0x6c] sm:$0xf]
      %v313 = vld [vmem:[%s1 + $0x70] sm:$0xf]
      %v314 = vld [vmem:[%s1 + $0x74] sm:$0xf]
      %v315 = vld [vmem:[%s1 + $0x78] sm:$0xf]
      %v316 = vld [vmem:[%s1 + $0x7c] sm:$0xf]
      %v317 = vld [vmem:[%s1 + $0x80] sm:$0xf]
      %v318 = vld [vmem:[%s1 + $0x84] sm:$0xf]
      %v319 = vld [vmem:[%s1 + $0x88] sm:$0xf]
      %v320 = vld [vmem:[%s1 + $0x8c] sm:$0xf]
      %v321 = vld [vmem:[%s1 + $0x90] sm:$0xf]
      %v322 = vld [vmem:[%s1 + $0x94] sm:$0xf]
      %v323 = vld [vmem:[%s1 + $0x98] sm:$0xf]
      %v324 = vld [vmem:[%s1 + $0x9c] sm:$0xf]
      %v325 = vld [vmem:[%s1 + $0xa0] sm:$0xf]
      %v326 = vld [vmem:[%s1 + $0xa4] sm:$0xf]
      %v327 = vld [vmem:[%s1 + $0xa8] sm:$0xf]
      %v328 = vld [vmem:[%s1 + $0xac] sm:$0xf]
      %v329 = vld [vmem:[%s1 + $0xb0] sm:$0xf]
      %v330 = vld [vmem:[%s1 + $0xb4] sm:$0xf]
      %v331 = vld [vmem:[%s1 + $0xb8] sm:$0xf]
      %v332 = vld [vmem:[%s1 + $0xbc] sm:$0xf]
      %v333 = vld [vmem:[%s1 + $0xc0] sm:$0xf]
      %v334 = vld [vmem:[%s1 + $0xc4] sm:$0xf]
      %v335 = vld [vmem:[%s1 + $0xc8] sm:$0xf]
      %v336 = vld [vmem:[%s1 + $0xcc] sm:$0xf]
      %v337 = vld [vmem:[%s1 + $0xd0] sm:$0xf]
      %v338 = vld [vmem:[%s1 + $0xd4] sm:$0xf]
      %v339 = vld [vmem:[%s1 + $0xd8] sm:$0xf]
      %v340 = vld [vmem:[%s1 + $0xdc] sm:$0xf]
      %v341 = vld [vmem:[%s1 + $0xe0] sm:$0xf]
      %v342 = vld [vmem:[%s1 + $0xe4] sm:$0xf]
      %v343 = vld [vmem:[%s1 + $0xe8] sm:$0xf]
      %v344 = vld [vmem:[%s1 + $0xec] sm:$0xf]
      %v345 = vld [vmem:[%s1 + $0xf0] sm:$0xf]
      %v346 = vld [vmem:[%s1 + $0xf4] sm:$0xf]
      %v347 = vld [vmem:[%s1 + $0xf8] sm:$0xf]
      %v348 = vld [vmem:[%s1 + $0xfc] sm:$0xf]
      %v349 = vld [vmem:[%s1 + $0x100] sm:$0xf]
      %v350 = vld [vmem:[%s1 + $0x104] sm:$0xf]
      %v351 = vld [vmem:[%s1 + $0x108] sm:$0xf]
      %v352 = vld [vmem:[%s1 + $0x10c] sm:$0xf]
      %v353 = vld [vmem:[%s1 + $0x110] sm:$0xf]
      %v354 = vld [vmem:[%s1 + $0x114] sm:$0xf]
      %v355 = vld [vmem:[%s1 + $0x118] sm:$0xf]
      %v356 = vld [vmem:[%s1 + $0x11c] sm:$0xf]
      %v357 = vld [vmem:[%s1 + $0x120] sm:$0xf]
      %v358 = vld [vmem:[%s1 + $0x124] sm:$0xf]
      %v359 = vld [vmem:[%s1 + $0x128] sm:$0xf]
      %v360 = vld [vmem:[%s1 + $0x12c] sm:$0xf]
      %v361 = vld [vmem:[%s1 + $0x130] sm:$0xf]
      %v362 = vld [vmem:[%s1 + $0x134] sm:$0xf]
      %v363 = vld [vmem:[%s1 + $0x138] sm:$0xf]
      %v364 = vld [vmem:[%s1 + $0x13c] sm:$0xf]
      %v365 = vld [vmem:[%s1 + $0x140] sm:$0xf]
      %v366 = vld [vmem:[%s1 + $0x144] sm:$0xf]
      %v367 = vld [vmem:[%s1 + $0x148] sm:$0xf]
      %v368 = vld [vmem:[%s1 + $0x14c] sm:$0xf]
      %v369 = vld [vmem:[%s1 + $0x150] sm:$0xf]
      %v370 = vld [vmem:[%s1 + $0x154] sm:$0xf]
      %v371 = vld [vmem:[%s1 + $0x158] sm:$0xf]
      %v372 = vld [vmem:[%s1 + $0x15c] sm:$0xf]
      %v373 = vld [vmem:[%s1 + $0x160] sm:$0xf]
      %v374 = vld [vmem:[%s1 + $0x164] sm:$0xf]
      %v375 = vld [vmem:[%s1 + $0x168] sm:$0xf]
      %v376 = vld [vmem:[%s1 + $0x16c] sm:$0xf]
      %v377 = vld [vmem:[%s1 + $0x170] sm:$0xf]
      %v378 = vld [vmem:[%s1 + $0x174] sm:$0xf]
      %v379 = vld [vmem:[%s1 + $0x178] sm:$0xf]
      %v380 = vld [vmem:[%s1 + $0x17c] sm:$0xf]
      %v381 = vld [vmem:[%s257] sm:$0x1]
      %v383 = vlaneseq
      %v384 = vshrl.u32 %v383, 7
      %v385 = vsub.s32 0, %v384
      %v386 = vrot.slane %v381, %v385
      %v394 = vunpack.c.l.b16 %v279
      %v395 = vunpack.c.h.b16 %v279
      %v396 = vunpack.c.l.b16 %v280
      %v397 = vunpack.c.h.b16 %v280
      %v398 = vunpack.c.l.b16 %v281
      %v399 = vunpack.c.h.b16 %v281
      %v400 = vunpack.c.l.b16 %v282
      %v401 = vunpack.c.h.b16 %v282
      %v402 = vunpack.c.l.b16 %v283
      %v403 = vunpack.c.h.b16 %v283
      %v404 = vunpack.c.l.b16 %v284
      %v405 = vunpack.c.h.b16 %v284
      %v406 = vpack.c.b16 %v400, %v394
      %v407 = vpack.c.b16 %v401, %v395
      %v408 = vpack.c.b16 %v402, %v396
      %v409 = vpack.c.b16 %v403, %v397
      %v410 = vpack.c.b16 %v404, %v398
      %v411 = vpack.c.b16 %v405, %v399
      %v514 = vunpack.c.l.b16 %v285
      %v515 = vunpack.c.l.b16 %v286
      %v516 = vunpack.c.l.b16 %v287
      %v517 = vunpack.c.l.b16 %v288
      %v518 = vunpack.c.l.b16 %v289
      %v519 = vunpack.c.l.b16 %v290
      %v520 = vunpack.c.l.b16 %v291
      %v521 = vunpack.c.l.b16 %v292
      %v522 = vunpack.c.l.b16 %v293
      %v523 = vunpack.c.l.b16 %v294
      %v524 = vunpack.c.l.b16 %v295
      %v525 = vunpack.c.l.b16 %v296
      %v526 = vunpack.c.l.b16 %v297
      %v527 = vunpack.c.l.b16 %v298
      %v528 = vunpack.c.l.b16 %v299
      %v529 = vunpack.c.l.b16 %v300
      %v530 = vunpack.c.l.b16 %v301
      %v531 = vunpack.c.l.b16 %v302
      %v532 = vunpack.c.l.b16 %v303
      %v533 = vunpack.c.l.b16 %v304
      %v534 = vunpack.c.l.b16 %v305
      %v535 = vunpack.c.l.b16 %v306
      %v536 = vunpack.c.l.b16 %v307
      %v537 = vunpack.c.l.b16 %v308
      %v538 = vunpack.c.l.b16 %v309
      %v539 = vunpack.c.l.b16 %v310
      %v540 = vunpack.c.l.b16 %v311
      %v541 = vunpack.c.l.b16 %v312
      %v542 = vunpack.c.l.b16 %v313
      %v543 = vunpack.c.l.b16 %v314
      %v544 = vunpack.c.l.b16 %v315
      %v545 = vunpack.c.l.b16 %v316
      %v546 = vunpack.c.l.b16 %v317
      %v547 = vunpack.c.l.b16 %v318
      %v548 = vunpack.c.l.b16 %v319
      %v549 = vunpack.c.l.b16 %v320
      %v550 = vunpack.c.l.b16 %v321
      %v551 = vunpack.c.l.b16 %v322
      %v552 = vunpack.c.l.b16 %v323
      %v553 = vunpack.c.l.b16 %v324
      %v554 = vunpack.c.l.b16 %v325
      %v555 = vunpack.c.l.b16 %v326
      %v556 = vunpack.c.l.b16 %v327
      %v557 = vunpack.c.l.b16 %v328
      %v558 = vunpack.c.l.b16 %v329
      %v559 = vunpack.c.l.b16 %v330
      %v560 = vunpack.c.l.b16 %v331
      %v561 = vunpack.c.l.b16 %v332
      %v562 = vunpack.c.l.b16 %v333
      %v563 = vunpack.c.l.b16 %v334
      %v564 = vunpack.c.l.b16 %v335
      %v565 = vunpack.c.l.b16 %v336
      %v566 = vunpack.c.l.b16 %v337
      %v567 = vunpack.c.l.b16 %v338
      %v568 = vunpack.c.l.b16 %v339
      %v569 = vunpack.c.l.b16 %v340
      %v570 = vunpack.c.l.b16 %v341
      %v571 = vunpack.c.l.b16 %v342
      %v572 = vunpack.c.l.b16 %v343
      %v573 = vunpack.c.l.b16 %v344
      %v574 = vunpack.c.l.b16 %v345
      %v575 = vunpack.c.l.b16 %v346
      %v576 = vunpack.c.l.b16 %v347
      %v577 = vunpack.c.l.b16 %v348
      %v578 = vunpack.c.l.b16 %v349
      %v579 = vunpack.c.l.b16 %v350
      %v580 = vunpack.c.l.b16 %v351
      %v581 = vunpack.c.l.b16 %v352
      %v582 = vunpack.c.l.b16 %v353
      %v583 = vunpack.c.l.b16 %v354
      %v584 = vunpack.c.l.b16 %v355
      %v585 = vunpack.c.l.b16 %v356
      %v586 = vunpack.c.l.b16 %v357
      %v587 = vunpack.c.l.b16 %v358
      %v588 = vunpack.c.l.b16 %v359
      %v589 = vunpack.c.l.b16 %v360
      %v590 = vunpack.c.l.b16 %v361
      %v591 = vunpack.c.l.b16 %v362
      %v592 = vunpack.c.l.b16 %v363
      %v593 = vunpack.c.l.b16 %v364
      %v594 = vunpack.c.l.b16 %v365
      %v595 = vunpack.c.l.b16 %v366
      %v596 = vunpack.c.l.b16 %v367
      %v597 = vunpack.c.l.b16 %v368
      %v598 = vunpack.c.l.b16 %v369
      %v599 = vunpack.c.l.b16 %v370
      %v600 = vunpack.c.l.b16 %v371
      %v601 = vunpack.c.l.b16 %v372
      %v602 = vunpack.c.l.b16 %v373
      %v603 = vunpack.c.l.b16 %v374
      %v604 = vunpack.c.l.b16 %v375
      %v605 = vunpack.c.l.b16 %v376
      %v606 = vunpack.c.l.b16 %v377
      %v607 = vunpack.c.l.b16 %v378
      %v608 = vunpack.c.l.b16 %v379
      %v609 = vunpack.c.l.b16 %v380
      %v610 = vpack.c.b16 %v515, %v514
      %v611 = vpack.c.b16 %v517, %v516
      %v612 = vpack.c.b16 %v519, %v518
      %v613 = vpack.c.b16 %v521, %v520
      %v614 = vpack.c.b16 %v523, %v522
      %v615 = vpack.c.b16 %v525, %v524
      %v616 = vpack.c.b16 %v527, %v526
      %v617 = vpack.c.b16 %v529, %v528
      %v618 = vpack.c.b16 %v531, %v530
      %v619 = vpack.c.b16 %v533, %v532
      %v620 = vpack.c.b16 %v535, %v534
      %v621 = vpack.c.b16 %v537, %v536
      %v622 = vpack.c.b16 %v539, %v538
      %v623 = vpack.c.b16 %v541, %v540
      %v624 = vpack.c.b16 %v543, %v542
      %v625 = vpack.c.b16 %v545, %v544
      %v626 = vpack.c.b16 %v547, %v546
      %v627 = vpack.c.b16 %v549, %v548
      %v628 = vpack.c.b16 %v551, %v550
      %v629 = vpack.c.b16 %v553, %v552
      %v630 = vpack.c.b16 %v555, %v554
      %v631 = vpack.c.b16 %v557, %v556
      %v632 = vpack.c.b16 %v559, %v558
      %v633 = vpack.c.b16 %v561, %v560
      %v634 = vpack.c.b16 %v563, %v562
      %v635 = vpack.c.b16 %v565, %v564
      %v636 = vpack.c.b16 %v567, %v566
      %v637 = vpack.c.b16 %v569, %v568
      %v638 = vpack.c.b16 %v571, %v570
      %v639 = vpack.c.b16 %v573, %v572
      %v640 = vpack.c.b16 %v575, %v574
      %v641 = vpack.c.b16 %v577, %v576
      %v642 = vpack.c.b16 %v579, %v578
      %v643 = vpack.c.b16 %v581, %v580
      %v644 = vpack.c.b16 %v583, %v582
      %v645 = vpack.c.b16 %v585, %v584
      %v646 = vpack.c.b16 %v587, %v586
      %v647 = vpack.c.b16 %v589, %v588
      %v648 = vpack.c.b16 %v591, %v590
      %v649 = vpack.c.b16 %v593, %v592
      %v650 = vpack.c.b16 %v595, %v594
      %v651 = vpack.c.b16 %v597, %v596
      %v652 = vpack.c.b16 %v599, %v598
      %v653 = vpack.c.b16 %v601, %v600
      %v654 = vpack.c.b16 %v603, %v602
      %v655 = vpack.c.b16 %v605, %v604
      %v656 = vpack.c.b16 %v607, %v606
      %v657 = vpack.c.b16 %v609, %v608
      %706 = vmatprep.subr.bf16.mxu0 0
      %707 = vmatpush1.bf16.msra.mxu0 %v617
      %708 = vmatprep.subr.bf16.mxu0 0
      %709 = vmatpush1.bf16.msra.mxu0 %v616
      %710 = vmatprep.subr.bf16.mxu0 0
      %711 = vmatpush1.bf16.msra.mxu0 %v615
      %712 = vmatprep.subr.bf16.mxu0 0
      %713 = vmatpush1.bf16.msra.mxu0 %v614
      %714 = vmatprep.subr.bf16.mxu0 0
      %715 = vmatpush1.bf16.msra.mxu0 %v613
      %716 = vmatprep.subr.bf16.mxu0 0
      %717 = vmatpush1.bf16.msra.mxu0 %v612
      %718 = vmatprep.subr.bf16.mxu0 0
      %719 = vmatpush1.bf16.msra.mxu0 %v611
      %720 = vmatprep.subr.bf16.mxu0 0
      %721 = vmatpush1.bf16.msra.mxu0 %v610
      %722 = vmatprep.subr.bf16.mxu0 0
      %723 = vmatpush2.bf16.msra.mxu0 %v625
      %724 = vmatprep.subr.bf16.mxu0 0
      %725 = vmatpush2.bf16.msra.mxu0 %v624
      %726 = vmatprep.subr.bf16.mxu0 0
      %727 = vmatpush2.bf16.msra.mxu0 %v623
      %728 = vmatprep.subr.bf16.mxu0 0
      %729 = vmatpush2.bf16.msra.mxu0 %v622
      %730 = vmatprep.subr.bf16.mxu0 0
      %731 = vmatpush2.bf16.msra.mxu0 %v621
      %732 = vmatprep.subr.bf16.mxu0 0
      %733 = vmatpush2.bf16.msra.mxu0 %v620
      %734 = vmatprep.subr.bf16.mxu0 0
      %735 = vmatpush2.bf16.msra.mxu0 %v619
      %736 = vmatprep.subr.bf16.mxu0 0
      %737 = vmatpush2.bf16.msra.mxu0 %v618
      %738 = vmatprep.mubr.bf16.mxu0 %v407
      %739 = vmatmul.mubr.bf16.gmra.mxu0 %v406
      %v740 = vpop.f32.mrf.mxu0
      %v741 = vadd.f32 %v386, %v740
      %v742 = vpop.f32.mrf.mxu0
      %v743 = vpop.f32.mrf.mxu0
      %v744 = vadd.f32 %v386, %v743
      %v745 = vpop.f32.mrf.mxu0
      %746 = vdwg.mxu0
      %747 = vmatprep.subr.bf16.mxu0 0
      %748 = vmatpush1.bf16.msra.mxu0 %v633
      %749 = vmatprep.subr.bf16.mxu0 0
      %750 = vmatpush1.bf16.msra.mxu0 %v632
      %751 = vmatprep.subr.bf16.mxu0 0
      %752 = vmatpush1.bf16.msra.mxu0 %v631
      %753 = vmatprep.subr.bf16.mxu0 0
      %754 = vmatpush1.bf16.msra.mxu0 %v630
      %755 = vmatprep.subr.bf16.mxu0 0
      %756 = vmatpush1.bf16.msra.mxu0 %v629
      %757 = vmatprep.subr.bf16.mxu0 0
      %758 = vmatpush1.bf16.msra.mxu0 %v628
      %759 = vmatprep.subr.bf16.mxu0 0
      %760 = vmatpush1.bf16.msra.mxu0 %v627
      %761 = vmatprep.subr.bf16.mxu0 0
      %762 = vmatpush1.bf16.msra.mxu0 %v626
      %763 = vmatprep.subr.bf16.mxu0 0
      %764 = vmatpush2.bf16.msra.mxu0 %v641
      %765 = vmatprep.subr.bf16.mxu0 0
      %766 = vmatpush2.bf16.msra.mxu0 %v640
      %767 = vmatprep.subr.bf16.mxu0 0
      %768 = vmatpush2.bf16.msra.mxu0 %v639
      %769 = vmatprep.subr.bf16.mxu0 0
      %770 = vmatpush2.bf16.msra.mxu0 %v638
      %771 = vmatprep.subr.bf16.mxu0 0
      %772 = vmatpush2.bf16.msra.mxu0 %v637
      %773 = vmatprep.subr.bf16.mxu0 0
      %774 = vmatpush2.bf16.msra.mxu0 %v636
      %775 = vmatprep.subr.bf16.mxu0 0
      %776 = vmatpush2.bf16.msra.mxu0 %v635
      %777 = vmatprep.subr.bf16.mxu0 0
      %778 = vmatpush2.bf16.msra.mxu0 %v634
      %779 = vmatprep.mubr.bf16.mxu0 %v409
      %780 = vmatmul.mubr.bf16.gmra.mxu0 %v408
      %v781 = vpop.f32.mrf.mxu0
      %v782 = vadd.f32 %v741, %v781
      %v783 = vpop.f32.mrf.mxu0
      %v784 = vpop.f32.mrf.mxu0
      %v785 = vadd.f32 %v744, %v784
      %v786 = vpop.f32.mrf.mxu0
      %787 = vdwg.mxu0
      %788 = vmatprep.subr.bf16.mxu0 0
      %789 = vmatpush1.bf16.msra.mxu0 %v649
      %790 = vmatprep.subr.bf16.mxu0 0
      %791 = vmatpush1.bf16.msra.mxu0 %v648
      %792 = vmatprep.subr.bf16.mxu0 0
      %793 = vmatpush1.bf16.msra.mxu0 %v647
      %794 = vmatprep.subr.bf16.mxu0 0
      %795 = vmatpush1.bf16.msra.mxu0 %v646
      %796 = vmatprep.subr.bf16.mxu0 0
      %797 = vmatpush1.bf16.msra.mxu0 %v645
      %798 = vmatprep.subr.bf16.mxu0 0
      %799 = vmatpush1.bf16.msra.mxu0 %v644
      %800 = vmatprep.subr.bf16.mxu0 0
      %801 = vmatpush1.bf16.msra.mxu0 %v643
      %802 = vmatprep.subr.bf16.mxu0 0
      %803 = vmatpush1.bf16.msra.mxu0 %v642
      %804 = vmatprep.subr.bf16.mxu0 0
      %805 = vmatpush2.bf16.msra.mxu0 %v657
      %806 = vmatprep.subr.bf16.mxu0 0
      %807 = vmatpush2.bf16.msra.mxu0 %v656
      %808 = vmatprep.subr.bf16.mxu0 0
      %809 = vmatpush2.bf16.msra.mxu0 %v655
      %810 = vmatprep.subr.bf16.mxu0 0
      %811 = vmatpush2.bf16.msra.mxu0 %v654
      %812 = vmatprep.subr.bf16.mxu0 0
      %813 = vmatpush2.bf16.msra.mxu0 %v653
      %814 = vmatprep.subr.bf16.mxu0 0
      %815 = vmatpush2.bf16.msra.mxu0 %v652
      %816 = vmatprep.subr.bf16.mxu0 0
      %817 = vmatpush2.bf16.msra.mxu0 %v651
      %818 = vmatprep.subr.bf16.mxu0 0
      %819 = vmatpush2.bf16.msra.mxu0 %v650
      %820 = vmatprep.mubr.bf16.mxu0 %v411
      %821 = vmatmul.mubr.bf16.gmra.mxu0 %v410
      %v822 = vpop.f32.mrf.mxu0
      %v823 = vadd.f32 %v782, %v822
      %v824 = vpop.f32.mrf.mxu0
      %v825 = vpop.f32.mrf.mxu0
      %v826 = vadd.f32 %v785, %v825
      %v827 = vpop.f32.mrf.mxu0
      %828 = vdwg.mxu0
      %v829 = vxor.u32 %v823, 2147483648
      %v830 = vxor.u32 %v826, 2147483648
      %v831 = vmul.f32 %v829, 1.442695
      %v832 = vpow.pop %v831
      %v833 = vmul.f32 %v830, 1.442695
      %v834 = vpow.pop %v833
      %v835 = vadd.f32 %v832, 1.0
      %v836 = vadd.f32 %v834, 1.0
      %v837 = vrcp.pop %v835
      %v838 = vmul.f32 1.0, %v837
      %v839 = vrcp.pop %v836
      %v840 = vmul.f32 1.0, %v839
      %v841 = vmul.f32 %v838, %v838
      %v842 = vmul.f32 %v840, %v840
      %v843 = vmul.f32 %v841, %v841
      %v844 = vmul.f32 %v842, %v842
      %vm845 = vcmask 801792
      %846 = vst.msk [vmem:[%s266] sm:$0xff] %vm845, %v843
      %847 = vst.msk [vmem:[%s266 + $0x8] sm:$0xff] %vm845, %v844
      %850 = vrot.lane.b32.xlu0 %v823, 30
      %v851 = vpop.permute.xlu0 %850
      %852 = vrot.lane.b32.xlu0 %v826, 30
      %v853 = vpop.permute.xlu0 %852
      %vm856 = vcmask 15360
      %857 = vst.msk [vmem:[%s276] sm:$0xff] %vm856, %v851
      %858 = vst.msk [vmem:[%s276 + $0x8] sm:$0xff] %vm856, %v853
      %s859 = smul.u32 2, %s21
      %p860 = scmp.lt.s32.totalorder %s20, 1
      %s861 = scalar_select %p860, %s20, 1
      %p862 = scmp.lt.s32.totalorder %s859, 1
      %s863 = scalar_select %p862, %s859, 1
      %s864 = smul.addr %s861, 2
      %s865 = sadd.s32 %s863, %s864
      %s866 = smul.addr %s865, 8
      %s867 = scalar_lea.vmem %s3, %s866
      %s868 = smul.u32 2, %s21
      %p869 = scmp.lt.s32.totalorder %s20, 1
      %s870 = scalar_select %p869, %s20, 1
      %p871 = scmp.lt.s32.totalorder %s868, 1
      %s872 = scalar_select %p871, %s868, 1
      %s873 = smul.addr %s870, 2
      %s874 = sadd.s32 %s872, %s873
      %s875 = smul.addr %s874, 8
      %s876 = scalar_lea.vmem %s4, %s875
      // Predicated region
      $region33: #{object_model_forward.1} parent=31 // pred_check
        %p877 = pneg %p123
      $region34: #{object_model_forward.1} parent=31 // pred_check_branch
        %879 = sbr.rel (%p877) target = $region36
      $region35: #{object_model_forward.1} parent=31 // pred_region
        %s880 = smul.u32 2, %s21
      $region36: #{object_model_forward.1} parent=31 // pred_fallthru
        _
      // Predicated region
      $region37: #{object_model_forward.1} parent=31 // pred_check
        %p881 = pneg %p151
      $region38: #{object_model_forward.1} parent=31 // pred_check_branch
        %883 = sbr.rel (%p881) target = $region40
      $region39: #{object_model_forward.1} parent=31 // pred_region
        %s884 = smul.u32 2, %s21
      $region40: #{object_model_forward.1} parent=31 // pred_fallthru
        _
    $region32: #{object_model_forward.1} parent=5 // pred_fallthru
      _
    %p885 = scmp.le.s32.totalorder 2, %s11
    // Predicated region
    $region41: #{object_model_forward.1} parent=5 // pred_check
      %p886 = pneg %p885
    $region42: #{object_model_forward.1} parent=5 // pred_check_branch
      %888 = sbr.rel (%p886) target = $region44
    $region43: #{object_model_forward.1} parent=5 // pred_region
      %s889 = ssub.s32 %s11, 2
      // Predicated region
      $region45: #{object_model_forward.1} parent=43 // pred_check
        %p890 = pneg %p129
      $region46: #{object_model_forward.1} parent=43 // pred_check_branch
        %892 = sbr.rel (%p890) target = $region48
      $region47: #{object_model_forward.1} parent=43 // pred_region
        %s893 = smul.u32 2, %s23
        %p894 = scmp.lt.s32.totalorder %s22, 1
        %s895 = scalar_select %p894, %s22, 1
        %p896 = scmp.lt.s32.totalorder %s893, 1
        %s897 = scalar_select %p896, %s893, 1
        %s898 = smul.addr %s895, 2
        %s899 = sadd.s32 %s897, %s898
        %s900 = smul.addr %s899, 8
        %s901 = scalar_lea.vmem %s3, %s900
      $region48: #{object_model_forward.1} parent=43 // pred_fallthru
        _
      // Predicated region
      $region49: #{object_model_forward.1} parent=43 // pred_check
        %p902 = pneg %p157
      $region50: #{object_model_forward.1} parent=43 // pred_check_branch
        %904 = sbr.rel (%p902) target = $region52
      $region51: #{object_model_forward.1} parent=43 // pred_region
        %s905 = smul.u32 2, %s23
        %p906 = scmp.lt.s32.totalorder %s22, 1
        %s907 = scalar_select %p906, %s22, 1
        %p908 = scmp.lt.s32.totalorder %s905, 1
        %s909 = scalar_select %p908, %s905, 1
        %s910 = smul.addr %s907, 2
        %s911 = sadd.s32 %s909, %s910
        %s912 = smul.addr %s911, 8
        %s913 = scalar_lea.vmem %s4, %s912
      $region52: #{object_model_forward.1} parent=43 // pred_fallthru
        _
    $region44: #{object_model_forward.1} parent=5 // pred_fallthru
      _
  $region6: #{object_model_forward.1} parent=0 // loop_footer
    %s15 = sadd.s32 1, %s11
  $region7: #{object_model_forward.1} parent=0 // loop_footer_branch
    %10 = sbr.rel target = $region3
  $region8: #{object_model_forward.1} parent=0 // loop_exit
    _

</llo_original>
